<compile_context>
chip_gen: v7x
topology: tpu7x:2x2x1
jax: 0.10.0
libtpu: 0.0.40
codegen_flags: <defaults>
</compile_context>

<pallas_src>
import functools
import numpy as np

import jax
import jax.numpy as jnp
from jax import lax
from jax.experimental import pallas as pl
from jax.experimental.pallas import tpu as pltpu

POOLING_SUM = 0
POOLING_MEAN = 1

MAX_BAG_TILE = 256   # bags per grid step (output tile rows / MXU M)
MAX_K_TILE = 512     # merged-table rows per weight slab (MXU K). With block-
                     # sparse slab skipping, a finer slab captures more sparsity;
                     # 512 balances skip granularity vs ~0.35us per-step overhead.
SEL_CHUNK = 128      # selection-matrix columns per register-resident chunk
UNROLL_LIMIT = 64    # static-unroll threshold for the per-bag-entry loop


def _round_up(x, m):
    return -(-x // m) * m


def _choose_bag_tile(n_bags):
    if n_bags >= MAX_BAG_TILE:
        return MAX_BAG_TILE
    return _round_up(max(n_bags, 8), 8)


def _pool_kernel(slab_map_ref, nvalid_ref, idx_ref, cnt_ref, w_ref, out_ref, *,
                 max_bag, pooling_mode, k_tile, max_slabs, sel_chunk,
                 cast_sel_to_bf16, dot_precision):
    """One (bag-tile, touched-slab) grid step.

    slab_map_ref : SMEM (n_bag_tiles*max_slabs,) int32  touched slab ids (padded
                   by repeating the last valid slab -> no extra weight DMA)
    nvalid_ref   : SMEM (n_bag_tiles,) int32            #touched slabs per tile
    idx_ref      : VMEM (R, max_bag) int32              merged row ids (-1 = pad)
    cnt_ref      : VMEM (R, 1) float32                  valid entries per bag
    w_ref        : VMEM (k_tile, D)                     touched weight slab
    out_ref      : VMEM (R, D) float32                  output tile, resident
                                                        across the k axis
    """
    g = pl.program_id(0)
    k = pl.program_id(1)

    @pl.when(k == 0)
    def _init():
        out_ref[...] = jnp.zeros_like(out_ref)

    @pl.when(k < nvalid_ref[g])
    def _accumulate():
        slab = slab_map_ref[g * max_slabs + k]
        k_start = slab * k_tile
        R = idx_ref.shape[0]
        idx_all = idx_ref[...]                    # hoist the (R, max_bag) load
        n_chunks = k_tile // sel_chunk
        for c in range(n_chunks):                 # static unroll over chunks
            base = k_start + c * sel_chunk
            # (1, sel_chunk) broadcast iota: no materialized (R, TK) buffer.
            col_iota = lax.broadcasted_iota(jnp.int32, (1, sel_chunk), 1) + base
            # Selection chunk stays register-resident (R x 128 f32 = 32 vregs).
            # Padding entries are -1 and never match col ids >= 0.
            sel = jnp.zeros((R, sel_chunk), jnp.float32)
            if max_bag <= UNROLL_LIMIT:
                for j in range(max_bag):          # static unroll (LLO visibility)
                    col = idx_all[:, j:j + 1]     # (R, 1) int32
                    sel = sel + (col == col_iota).astype(jnp.float32)
            else:
                def body(j, s):
                    col = lax.dynamic_slice_in_dim(idx_all, j, 1, axis=1)
                    return s + (col == col_iota).astype(jnp.float32)
                sel = lax.fori_loop(0, max_bag, body, sel, unroll=4)
            w_chunk = w_ref[c * sel_chunk:(c + 1) * sel_chunk, :]
            # bf16 LHS only when the weights are bf16 (sel multiplicities are
            # small integers, exact in bf16); f32 weights keep an exact f32 dot.
            lhs = sel.astype(jnp.bfloat16) if cast_sel_to_bf16 else sel
            out_ref[...] += jnp.dot(lhs, w_chunk,
                                    preferred_element_type=jnp.float32,
                                    precision=dot_precision)

    if pooling_mode == POOLING_MEAN:
        @pl.when(k == pl.num_programs(1) - 1)
        def _finalize():
            # Exact division (approx reciprocal dropped per correctness review).
            out_ref[...] = out_ref[...] / jnp.maximum(cnt_ref[...], 1.0)


def merged_embeddingbag_forward_pallas(merged_weight_padded, idx_pad, cnt,
                                       slab_map, n_valid, pooling_mode,
                                       bag_tile, k_tile, max_slabs):
    n_bags_pad, max_bag = idx_pad.shape
    total_rows_pad, D = merged_weight_padded.shape
    assert n_bags_pad % bag_tile == 0 and total_rows_pad % k_tile == 0
    n_bag_tiles = n_bags_pad // bag_tile

    w_dtype = jnp.dtype(merged_weight_padded.dtype)
    cast_sel_to_bf16 = (w_dtype == jnp.dtype(jnp.bfloat16))
    dot_precision = (lax.Precision.DEFAULT if cast_sel_to_bf16
                     else lax.Precision.HIGHEST)
    sel_chunk = min(SEL_CHUNK, k_tile)

    kernel = functools.partial(
        _pool_kernel,
        max_bag=int(max_bag), pooling_mode=int(pooling_mode),
        k_tile=int(k_tile), max_slabs=int(max_slabs), sel_chunk=int(sel_chunk),
        cast_sel_to_bf16=bool(cast_sel_to_bf16), dot_precision=dot_precision)

    itemsize = int(np.dtype(merged_weight_padded.dtype).itemsize)
    touched = max(int(np.asarray(n_valid).sum()), 1)
    cost = pl.CostEstimate(
        flops=2 * bag_tile * k_tile * D * touched,
        transcendentals=0,
        bytes_accessed=(touched * k_tile * D * itemsize      # only touched slabs
                        + n_bags_pad * max_bag * 4
                        + n_bags_pad * 4
                        + n_bags_pad * D * 4),
    )

    return pl.pallas_call(
        kernel,
        out_shape=jax.ShapeDtypeStruct((n_bags_pad, D), jnp.float32),
        grid_spec=pltpu.PrefetchScalarGridSpec(
            num_scalar_prefetch=2,                 # slab_map, n_valid -> SMEM
            grid=(n_bag_tiles, max_slabs),
            in_specs=[
                # per-tile bag indices / counts (small, resident across k)
                pl.BlockSpec((bag_tile, max_bag), lambda g, k, sm, nv: (g, 0)),
                pl.BlockSpec((bag_tile, 1), lambda g, k, sm, nv: (g, 0)),
                # merged weight: only the slabs this bag tile touches are DMA'd
                pl.BlockSpec((k_tile, D),
                             lambda g, k, sm, nv: (sm[g * max_slabs + k], 0)),
            ],
            out_specs=pl.BlockSpec((bag_tile, D), lambda g, k, sm, nv: (g, 0)),
        ),
        compiler_params=pltpu.CompilerParams(
            dimension_semantics=("parallel", "arbitrary")),
        cost_estimate=cost,
    )(slab_map, n_valid, idx_pad, cnt, merged_weight_padded)


# --------------------- host preprocessing (vectorized numpy) ---------------------

def linearize_indices_and_offsets(indices_list, offsets_list, table_sizes, batch,
                                  include_last_offset):
    """Build padded (bags x max_bag) merged-row-id matrix + per-bag counts."""
    n_tables = len(table_sizes)
    row_start = np.cumsum([0] + list(table_sizes))[:-1]
    per_table = []
    max_bag = 1
    for t in range(n_tables):
        ind = np.asarray(indices_list[t], dtype=np.int64)
        off = np.asarray(offsets_list[t], dtype=np.int64)
        if include_last_offset:
            starts, ends = off[:-1], off[1:]
        else:
            starts = off
            ends = np.concatenate([off[1:], np.array([len(ind)], dtype=np.int64)])
        lengths = ends - starts
        if lengths.size:
            max_bag = max(max_bag, int(lengths.max()))
        per_table.append((ind, starts, lengths))

    n_bags = n_tables * batch
    bag_tile = _choose_bag_tile(n_bags)
    n_bags_pad = _round_up(n_bags, bag_tile)
    idx_pad = np.full((n_bags_pad, max_bag), -1, np.int32)   # -1 = never matches
    cnt = np.zeros((n_bags_pad, 1), np.float32)
    j_iota = np.arange(max_bag)
    for t, (ind, starts, lengths) in enumerate(per_table):
        valid = j_iota[None, :] < lengths[:, None]
        if len(ind) == 0:
            rows = np.full((batch, max_bag), -1, np.int32)
        else:
            pos = np.minimum(starts[:, None] + j_iota[None, :], len(ind) - 1)
            rows = np.where(valid, ind[pos] + row_start[t], -1).astype(np.int32)
        idx_pad[t * batch:(t + 1) * batch] = rows
        cnt[t * batch:(t + 1) * batch, 0] = lengths
    return idx_pad, cnt, n_bags, bag_tile, max_bag


def build_slab_map(idx_pad, bag_tile, k_tile):
    """Per bag tile: sorted unique k-slabs touched (+ counts), padded by
    repeating the last valid slab so padded steps cause no extra DMA."""
    n_bags_pad = idx_pad.shape[0]
    n_tiles = n_bags_pad // bag_tile
    slab_lists = []
    max_slabs = 1
    for g in range(n_tiles):
        tile = idx_pad[g * bag_tile:(g + 1) * bag_tile]
        valid = tile[tile >= 0]
        slabs = (np.unique(valid // k_tile).astype(np.int32)
                 if valid.size else np.zeros((0,), np.int32))
        slab_lists.append(slabs)
        max_slabs = max(max_slabs, max(len(slabs), 1))
    slab_map = np.zeros((n_tiles, max_slabs), np.int32)
    n_valid = np.zeros((n_tiles,), np.int32)
    for g, slabs in enumerate(slab_lists):
        n_valid[g] = len(slabs)
        if len(slabs):
            slab_map[g, :len(slabs)] = slabs
            slab_map[g, len(slabs):] = slabs[-1]
    return slab_map.reshape(-1), n_valid, max_slabs


class MergedEmbeddingBagWithSGDPallas:
    """Forward-only JAX/Pallas equivalent of MergedEmbeddingBagWithSGD."""

    def __init__(self, table_sizes, embedding_dim, pooling_mode, lr=0.01,
                 weight_decay=0.0, include_last_offset=False, key=None,
                 dtype=jnp.float32):
        assert pooling_mode in ("sum", "mean")
        self.table_sizes = list(table_sizes)
        self.embedding_dim = embedding_dim
        self.pooling_mode = POOLING_SUM if pooling_mode == "sum" else POOLING_MEAN
        self.include_last_offset = include_last_offset
        self.lr = lr                      # kept for parity with the PyTorch module
        self.weight_decay = weight_decay  # (only used in fused backward)
        self.dtype = dtype
        key = jax.random.PRNGKey(0) if key is None else key
        keys = jax.random.split(key, len(table_sizes))
        # nn.EmbeddingBag default init: N(0, 1), deterministic here.
        self.weights = [
            jax.random.normal(keys[i], (n, embedding_dim),
                              dtype=jnp.float32).astype(dtype)
            for i, n in enumerate(table_sizes)
        ]
        merged = jnp.concatenate(self.weights, axis=0)
        total_rows = merged.shape[0]
        self.k_tile = min(MAX_K_TILE, _round_up(total_rows, 128))
        total_rows_pad = _round_up(total_rows, self.k_tile)
        pad = total_rows_pad - total_rows
        self.merged_weight_padded = (
            jnp.pad(merged, ((0, pad), (0, 0))) if pad else merged)

    def forward(self, indices, offsets):
        batch = (np.asarray(offsets[0]).shape[0] - 1
                 if self.include_last_offset else np.asarray(offsets[0]).shape[0])
        idx_pad, cnt, n_bags, bag_tile, _ = linearize_indices_and_offsets(
            indices, offsets, self.table_sizes, batch, self.include_last_offset)
        slab_map, n_valid, max_slabs = build_slab_map(idx_pad, bag_tile,
                                                      self.k_tile)
        merged_out = merged_embeddingbag_forward_pallas(
            self.merged_weight_padded,
            jnp.asarray(idx_pad), jnp.asarray(cnt),
            jnp.asarray(slab_map), jnp.asarray(n_valid),
            self.pooling_mode, bag_tile, self.k_tile, max_slabs)
        if merged_out.dtype != self.dtype:
            merged_out = merged_out.astype(self.dtype)
        outs = []
        for t in range(len(self.table_sizes)):
            outs.append(merged_out[t * batch:(t + 1) * batch, :])
        return outs

    __call__ = forward


def _reference_forward(module, indices, offsets):
    """Pure numpy reference (EmbeddingBag per table)."""
    outs = []
    batch = (np.asarray(offsets[0]).shape[0] - 1
             if module.include_last_offset else np.asarray(offsets[0]).shape[0])
    for t, w in enumerate(module.weights):
        w = np.asarray(w, dtype=np.float32)
        ind = np.asarray(indices[t])
        off = np.asarray(offsets[t])
        if module.include_last_offset:
            starts, ends = off[:-1], off[1:]
        else:
            starts = off
            ends = np.concatenate([off[1:], np.array([len(ind)])])
        out = np.zeros((batch, module.embedding_dim), np.float32)
        for b in range(batch):
            rows = w[ind[starts[b]:ends[b]]]
            if rows.shape[0] == 0:
                continue
            s = rows.sum(axis=0)
            if module.pooling_mode == POOLING_MEAN:
                s = s / rows.shape[0]
            out[b] = s
        outs.append(out)
    return outs


if __name__ == "__main__":
    key = jax.random.PRNGKey(0)
    k_w, k_sz, k_idx = jax.random.split(key, 3)

    # Small, deterministic problem: 3 tables, batch=4, embedding_dim=128.
    table_sizes = [24, 16, 40]
    embedding_dim = 128
    batch = 4
    pooling = "mean"
    include_last_offset = False

    module = MergedEmbeddingBagWithSGDPallas(
        table_sizes, embedding_dim, pooling, lr=0.01, weight_decay=0.0,
        include_last_offset=include_last_offset, key=k_w)

    # Build per-table indices / offsets (variable bag sizes in [1, 5]).
    rng_sizes = np.asarray(
        jax.random.randint(k_sz, (len(table_sizes), batch), 1, 6))
    idx_keys = jax.random.split(k_idx, len(table_sizes))
    indices, offsets = [], []
    for t, n_rows in enumerate(table_sizes):
        sizes = rng_sizes[t]
        total = int(sizes.sum())
        ind = jax.random.randint(idx_keys[t], (total,), 0, n_rows, dtype=jnp.int32)
        off = np.concatenate([[0], np.cumsum(sizes)[:-1]]).astype(np.int32)
        indices.append(np.asarray(ind))
        offsets.append(off)

    outs = module(indices, offsets)
    outs = [jax.block_until_ready(o) for o in outs]

    refs = _reference_forward(module, indices, offsets)
    for o, r in zip(outs, refs):
        # exact division + precision=HIGHEST f32 dot -> tight tolerance
        np.testing.assert_allclose(np.asarray(o), r, rtol=2e-5, atol=2e-5)

    print("KERNEL_OK")
</pallas_src>

<mosaic_0001>
module attributes {stable_mosaic.version = 11 : i64} {
  func.func @_pool_kernel(%arg0: i32, %arg1: i32, %arg2: memref<1xi32, #tpu.memory_space<smem>>, %arg3: memref<1xi32, #tpu.memory_space<smem>>, %arg4: memref<16x5xi32, #tpu.memory_space<vmem>>, %arg5: memref<16x1xf32, #tpu.memory_space<vmem>>, %arg6: memref<128x128xf32, #tpu.memory_space<vmem>>, %arg7: memref<16x128xf32, #tpu.memory_space<vmem>>) attributes {dimension_semantics = [#tpu.dimension_semantics<parallel>, #tpu.dimension_semantics<arbitrary>], iteration_bounds = array<i64: 1, 1>, scalar_prefetch = 2 : i64, scratch_operands = 0 : i64, tpu.core_type = #tpu.core_type<tc>, window_params = [{transform_indices = @transform_0, window_bounds = array<i64: 16, 5>}, {transform_indices = @transform_1, window_bounds = array<i64: 16, 1>}, {transform_indices = @transform_2, window_bounds = array<i64: 128, 128>}, {transform_indices = @transform_3, window_bounds = array<i64: 16, 128>}]} {
    %c0_i32 = arith.constant 0 : i32
    %0 = arith.cmpi eq, %arg1, %c0_i32 : i32
    %1 = arith.extui %0 : i1 to i32
    %c0_i32_0 = arith.constant 0 : i32
    %2 = arith.cmpi ne, %1, %c0_i32_0 : i32
    scf.if %2 {
      %cst = arith.constant 0.000000e+00 : f32
      %11 = vector.broadcast %cst : f32 to vector<16x128xf32>
      %c0 = arith.constant 0 : index
      %c0_4 = arith.constant 0 : index
      %12 = vector.load %arg7[%c0, %c0_4] : memref<16x128xf32, #tpu.memory_space<vmem>>, vector<16x128xf32>
      tpu.vector_store %arg7[%c0, %c0_4], %11 {strides = array<i32>} : memref<16x128xf32, #tpu.memory_space<vmem>>, vector<16x128xf32>,
    } else {
    }
    %3 = arith.index_cast %arg0 : i32 to index
    %4 = memref.load %arg3[%3] : memref<1xi32, #tpu.memory_space<smem>>
    %5 = arith.cmpi slt, %arg1, %4 : i32
    %6 = arith.extui %5 : i1 to i32
    %c0_i32_1 = arith.constant 0 : i32
    %7 = arith.cmpi ne, %6, %c0_i32_1 : i32
    scf.if %7 {
      %c1_i32 = arith.constant 1 : i32
      %11 = arith.muli %arg0, %c1_i32 : i32
      %12 = arith.addi %11, %arg1 : i32
      %13 = arith.index_cast %12 : i32 to index
      %14 = memref.load %arg2[%13] : memref<1xi32, #tpu.memory_space<smem>>
      %c128_i32 = arith.constant 128 : i32
      %15 = arith.muli %14, %c128_i32 : i32
      %c0 = arith.constant 0 : index
      %c0_4 = arith.constant 0 : index
      %16 = vector.load %arg4[%c0, %c0_4] : memref<16x5xi32, #tpu.memory_space<vmem>>, vector<16x5xi32>
      %c0_i32_5 = arith.constant 0 : i32
      %17 = arith.addi %15, %c0_i32_5 : i32
      %18 = tpu.iota {dimensions = array<i32: 1>} : vector<1x128xi32>
      %19 = vector.broadcast %17 : i32 to vector<1x128xi32>
      %20 = arith.addi %18, %19 : vector<1x128xi32>
      %cst = arith.constant 0.000000e+00 : f32
      %21 = vector.broadcast %cst : f32 to vector<16x128xf32>
      %22 = vector.extract_strided_slice %16 {offsets = [0, 0], sizes = [16, 1], strides = [1, 1]} : vector<16x5xi32> to vector<16x1xi32>
      %23 = vector.broadcast %22 : vector<16x1xi32> to vector<16x128xi32>
      %24 = vector.broadcast %20 : vector<1x128xi32> to vector<16x128xi32>
      %25 = arith.cmpi eq, %23, %24 : vector<16x128xi32>
      %26 = arith.extui %25 : vector<16x128xi1> to vector<16x128xi32>
      %27 = arith.sitofp %26 : vector<16x128xi32> to vector<16x128xf32>
      %28 = arith.addf %21, %27 : vector<16x128xf32>
      %29 = vector.extract_strided_slice %16 {offsets = [0, 1], sizes = [16, 1], strides = [1, 1]} : vector<16x5xi32> to vector<16x1xi32>
      %30 = vector.broadcast %29 : vector<16x1xi32> to vector<16x128xi32>
      %31 = vector.broadcast %20 : vector<1x128xi32> to vector<16x128xi32>
      %32 = arith.cmpi eq, %30, %31 : vector<16x128xi32>
      %33 = arith.extui %32 : vector<16x128xi1> to vector<16x128xi32>
      %34 = arith.sitofp %33 : vector<16x128xi32> to vector<16x128xf32>
      %35 = arith.addf %28, %34 : vector<16x128xf32>
      %36 = vector.extract_strided_slice %16 {offsets = [0, 2], sizes = [16, 1], strides = [1, 1]} : vector<16x5xi32> to vector<16x1xi32>
      %37 = vector.broadcast %36 : vector<16x1xi32> to vector<16x128xi32>
      %38 = vector.broadcast %20 : vector<1x128xi32> to vector<16x128xi32>
      %39 = arith.cmpi eq, %37, %38 : vector<16x128xi32>
      %40 = arith.extui %39 : vector<16x128xi1> to vector<16x128xi32>
      %41 = arith.sitofp %40 : vector<16x128xi32> to vector<16x128xf32>
      %42 = arith.addf %35, %41 : vector<16x128xf32>
      %43 = vector.extract_strided_slice %16 {offsets = [0, 3], sizes = [16, 1], strides = [1, 1]} : vector<16x5xi32> to vector<16x1xi32>
      %44 = vector.broadcast %43 : vector<16x1xi32> to vector<16x128xi32>
      %45 = vector.broadcast %20 : vector<1x128xi32> to vector<16x128xi32>
      %46 = arith.cmpi eq, %44, %45 : vector<16x128xi32>
      %47 = arith.extui %46 : vector<16x128xi1> to vector<16x128xi32>
      %48 = arith.sitofp %47 : vector<16x128xi32> to vector<16x128xf32>
      %49 = arith.addf %42, %48 : vector<16x128xf32>
      %50 = vector.extract_strided_slice %16 {offsets = [0, 4], sizes = [16, 1], strides = [1, 1]} : vector<16x5xi32> to vector<16x1xi32>
      %51 = vector.broadcast %50 : vector<16x1xi32> to vector<16x128xi32>
      %52 = vector.broadcast %20 : vector<1x128xi32> to vector<16x128xi32>
      %53 = arith.cmpi eq, %51, %52 : vector<16x128xi32>
      %54 = arith.extui %53 : vector<16x128xi1> to vector<16x128xi32>
      %55 = arith.sitofp %54 : vector<16x128xi32> to vector<16x128xf32>
      %56 = arith.addf %49, %55 : vector<16x128xf32>
      %c0_6 = arith.constant 0 : index
      %c0_7 = arith.constant 0 : index
      %57 = vector.load %arg6[%c0_6, %c0_7] : memref<128x128xf32, #tpu.memory_space<vmem>>, vector<128x128xf32>
      %c0_8 = arith.constant 0 : index
      %c0_9 = arith.constant 0 : index
      %58 = vector.load %arg7[%c0_8, %c0_9] : memref<16x128xf32, #tpu.memory_space<vmem>>, vector<16x128xf32>
      %cst_10 = arith.constant dense<0.000000e+00> : vector<16x128xf32>
      %59 = tpu.matmul %56, %57, %cst_10 {dimension_numbers = #tpu.dot_dimension_numbers<[1], [0], [0], [1], [0, 0, 1, 1], [], []>, precision = #tpu.contract_precision<fp32>} : vector<16x128xf32>, vector<128x128xf32>, vector<16x128xf32> -> vector<16x128xf32>
      %60 = arith.addf %58, %59 : vector<16x128xf32>
      %c0_11 = arith.constant 0 : index
      %c0_12 = arith.constant 0 : index
      %61 = vector.load %arg7[%c0_11, %c0_12] : memref<16x128xf32, #tpu.memory_space<vmem>>, vector<16x128xf32>
      tpu.vector_store %arg7[%c0_11, %c0_12], %60 {strides = array<i32>} : memref<16x128xf32, #tpu.memory_space<vmem>>, vector<16x128xf32>,
    } else {
    }
    %c0_i32_2 = arith.constant 0 : i32
    %8 = arith.cmpi eq, %arg1, %c0_i32_2 : i32
    %9 = arith.extui %8 : i1 to i32
    %c0_i32_3 = arith.constant 0 : i32
    %10 = arith.cmpi ne, %9, %c0_i32_3 : i32
    scf.if %10 {
      %c0 = arith.constant 0 : index
      %c0_4 = arith.constant 0 : index
      %11 = vector.load %arg7[%c0, %c0_4] : memref<16x128xf32, #tpu.memory_space<vmem>>, vector<16x128xf32>
      %c0_5 = arith.constant 0 : index
      %c0_6 = arith.constant 0 : index
      %12 = vector.load %arg5[%c0_5, %c0_6] : memref<16x1xf32, #tpu.memory_space<vmem>>, vector<16x1xf32>
      %cst = arith.constant 1.000000e+00 : f32
      %13 = vector.broadcast %cst : f32 to vector<16x1xf32>
      %14 = arith.maximumf %12, %13 : vector<16x1xf32>
      %15 = vector.broadcast %14 : vector<16x1xf32> to vector<16x128xf32>
      %16 = arith.divf %11, %15 : vector<16x128xf32>
      %c0_7 = arith.constant 0 : index
      %c0_8 = arith.constant 0 : index
      %17 = vector.load %arg7[%c0_7, %c0_8] : memref<16x128xf32, #tpu.memory_space<vmem>>, vector<16x128xf32>
      tpu.vector_store %arg7[%c0_7, %c0_8], %16 {strides = array<i32>} : memref<16x128xf32, #tpu.memory_space<vmem>>, vector<16x128xf32>,
    } else {
    }
    return
  }
  func.func @transform_0(%arg0: i32, %arg1: i32, %arg2: memref<1xi32, #tpu.memory_space<smem>>, %arg3: memref<1xi32, #tpu.memory_space<smem>>) -> (i32, i32) {
    %c0_i32 = arith.constant 0 : i32
    %c0_i32_0 = arith.constant 0 : i32
    return %arg0, %c0_i32 : i32, i32
  }
  func.func @transform_1(%arg0: i32, %arg1: i32, %arg2: memref<1xi32, #tpu.memory_space<smem>>, %arg3: memref<1xi32, #tpu.memory_space<smem>>) -> (i32, i32) {
    %c0_i32 = arith.constant 0 : i32
    %c0_i32_0 = arith.constant 0 : i32
    return %arg0, %c0_i32 : i32, i32
  }
  func.func @transform_2(%arg0: i32, %arg1: i32, %arg2: memref<1xi32, #tpu.memory_space<smem>>, %arg3: memref<1xi32, #tpu.memory_space<smem>>) -> (i32, i32) {
    %c1_i32 = arith.constant 1 : i32
    %0 = arith.muli %arg0, %c1_i32 : i32
    %1 = arith.addi %0, %arg1 : i32
    %2 = arith.index_cast %1 : i32 to index
    %3 = memref.load %arg2[%2] : memref<1xi32, #tpu.memory_space<smem>>
    %c0_i32 = arith.constant 0 : i32
    %c0_i32_0 = arith.constant 0 : i32
    return %3, %c0_i32 : i32, i32
  }
  func.func @transform_3(%arg0: i32, %arg1: i32, %arg2: memref<1xi32, #tpu.memory_space<smem>>, %arg3: memref<1xi32, #tpu.memory_space<smem>>) -> (i32, i32) {
    %c0_i32 = arith.constant 0 : i32
    %c0_i32_0 = arith.constant 0 : i32
    return %arg0, %c0_i32 : i32, i32
  }
}

</mosaic_0001>

<llo_original>
// kernel: tpu_custom_call.1
$region0: #{tpu_custom_call.1}
  #allocation0 [shape = 'u32[]', space=smem, size = 0x4, offset = 0x4, fixed_abs, tag = 'smem constant byte address 0x4 - core index']
  #allocation1 [shape = 'u32[144,128]{1,0:T(1,128)}', space=vmem, size = 0x12000, scoped, tag = 'internal scratch']
  #allocation2 [shape = 's32[1]{0}', space=sflag, size = 0x4, scoped, tag = 'scoped memory for tpu_custom_call.1']
  #allocation3 [shape = 's32[1]{0:T(128)S(6)}', space=smem, size = 0x200, scoped, tag = 'prefetched SMEM operand 0']
  #allocation4 [shape = 's32[1]{0:T(128)S(6)}', space=smem, size = 0x200, scoped, tag = 'prefetched SMEM operand 1']
  %s0 = inlined_call_operand.<no memory space> [shape: s32[1], index: 0, kind: input, shape index: {}]
  %s1 = inlined_call_operand.<no memory space> [shape: s32[1], index: 1, kind: input, shape index: {}]
  %s2 = inlined_call_operand.vmem [shape: s32[16,5], index: 2, kind: input, shape index: {}]
  %s3 = inlined_call_operand.vmem [shape: f32[16,1], index: 3, kind: input, shape index: {}]
  %s4 = inlined_call_operand.hbm [shape: f32[128,128], index: 4, kind: input, shape index: {}]
  %s5 = inlined_call_operand.hbm [shape: f32[16,128], index: 5, kind: output, shape index: {}]
  %s6 = sld [smem:[#allocation0]]
  $region38: #{tpu_custom_call.1} parent=0
    _
  %s8 = ssub.s32 1, %s6
  %s9 = scalar_select 0, %s8, %s6
  %10 = sst [smem:[#allocation3]] %s0
  %11 = sst [smem:[#allocation4]] %s1
  $region1: #{tpu_custom_call.1} parent=0
    #allocation5 [shape = 'u8[65536]{0}', space=vmem, size = 0x10000, scoped, tag = 'input window, operand 4, single buffered']
    #allocation6 [shape = 's32[1]{0}', space=sflag, size = 0x4, scoped, tag = 'scoped memory for tpu_custom_call.1']
    #allocation7 [shape = 's32[1]{0}', space=sflag, size = 0x4, scoped, tag = 'scoped memory for tpu_custom_call.1']
    #allocation8 [shape = 'u8[8192]{0}', space=vmem, size = 0x2000, scoped, tag = 'output window, operand 0, single buffered']
    %12 = vsyncpa [#allocation6], 0
    %13 = vsyncpa [#allocation7], 0
    // Predicated region
    $region2: #{tpu_custom_call.1} parent=1 // pred_check
      _
    $region3: #{tpu_custom_call.1} parent=1 // pred_check_branch
      %15 = sbr.rel (0) target = $region5
    $region4: #{tpu_custom_call.1} parent=1 // pred_region
      _
    $region5: #{tpu_custom_call.1} parent=1 // pred_fallthru
      _
    // Predicated region
    $region6: #{tpu_custom_call.1} parent=1 // pred_check
      _
    $region7: #{tpu_custom_call.1} parent=1 // pred_check_branch
      %17 = sbr.rel (0) target = $region9
    $region8: #{tpu_custom_call.1} parent=1 // pred_region
      _
    $region9: #{tpu_custom_call.1} parent=1 // pred_fallthru
      _
    // Predicated region
    $region10: #{tpu_custom_call.1} parent=1 // pred_check
      _
    $region11: #{tpu_custom_call.1} parent=1 // pred_check_branch
      %19 = sbr.rel (0) target = $region13
    $region12: #{tpu_custom_call.1} parent=1 // pred_region
      %s20 = sadd.s32 0, 0
      %s21 = sld [smem:[#allocation3 + %s20]]
      %s22 = smul.u32 16, %s21
      %s24 = ssub.s32 2048, 2048
      %25 = vsyncadd [#allocation6], %s24
      %s26 = smul.addr %s22, 128
      %s27 = scalar_lea.hbm %s4, %s26
      %s28 = sshll.u32 [#allocation5], 4
      %s29 = int_to_ptr.vmem [resolvable:$true] %s28
      %34 = dma.hbm_to_vmem [thread:$0]  %s27, 2048, %s29, [#allocation6], 128, 128, 8
    $region13: #{tpu_custom_call.1} parent=1 // pred_fallthru
      _
    // Predicated region
    $region14: #{tpu_custom_call.1} parent=1 // pred_check
      _
    $region15: #{tpu_custom_call.1} parent=1 // pred_check_branch
      %36 = sbr.rel (0) target = $region17
    $region16: #{tpu_custom_call.1} parent=1 // pred_region
      %37 = dma.done [#allocation6], 2048
    $region17: #{tpu_custom_call.1} parent=1 // pred_fallthru
      _
    %s38 = sadd.s32 0, 0
    %s39 = sld [smem:[#allocation3 + %s38]]
    %s40 = smul.u32 16, %s39
    %p41 = scmp.eq.s32.totalorder 0, 0
    // Predicated region
    $region18: #{tpu_custom_call.1} parent=1 // pred_check
      %p42 = pneg %p41
    $region19: #{tpu_custom_call.1} parent=1 // pred_check_branch
      %44 = sbr.rel (%p42) target = $region21
    $region20: #{tpu_custom_call.1} parent=1 // pred_region
      %45 = vst [vmem:[#allocation8] sm:$0xff] 0.0
      %46 = vst [vmem:[#allocation8 + $0x8] sm:$0xff] 0.0
    $region21: #{tpu_custom_call.1} parent=1 // pred_fallthru
      _
    %s47 = sld [smem:[#allocation4]]
    %p48 = scmp.lt.s32.totalorder 0, %s47
    // Predicated region
    $region22: #{tpu_custom_call.1} parent=1 // pred_check
      %p49 = pneg %p48
    $region23: #{tpu_custom_call.1} parent=1 // pred_check_branch
      %51 = sbr.rel (%p49) target = $region25
    $region24: #{tpu_custom_call.1} parent=1 // pred_region
      %s52 = sadd.s32 0, 0
      %s53 = sld [smem:[#allocation3 + %s52]]
      %s54 = smul.u32 %s53, 128
      %v55 = vld [vmem:[%s2] sm:$0xff]
      %v56 = vld [vmem:[%s2 + $0x8] sm:$0xff]
      %v57 = vlaneseq
      %v58 = vand.u32 %v57, 127
      %v59 = vstv %s54
      %v60 = vadd.s32 %v58, %v59
      %61 = vset.pattern.permute.xlu0 0
      %62 = vperm.xlu0 %61, %v55
      %v63 = vpop.permute.xlu0 %62
      %64 = vset.pattern.permute.xlu0 0
      %65 = vperm.xlu0 %64, %v56
      %v66 = vpop.permute.xlu0 %65
      %vm67 = vcmp.eq.s32.totalorder %v63, %v60
      %vm68 = vcmp.eq.s32.totalorder %v66, %v60
      %v69 = vsel %vm67, 1, 0
      %v70 = vsel %vm68, 1, 0
      %v71 = vcvt.s32.f32 %v69
      %v72 = vcvt.s32.f32 %v70
      %v73 = vadd.f32 %v71, 0.0
      %v74 = vadd.f32 %v72, 0.0
      %75 = vset.pattern.permute.xlu0 1
      %76 = vperm.xlu0 %75, %v55
      %v77 = vpop.permute.xlu0 %76
      %78 = vset.pattern.permute.xlu0 1
      %79 = vperm.xlu0 %78, %v56
      %v80 = vpop.permute.xlu0 %79
      %vm81 = vcmp.eq.s32.totalorder %v77, %v60
      %vm82 = vcmp.eq.s32.totalorder %v80, %v60
      %v83 = vsel %vm81, 1, 0
      %v84 = vsel %vm82, 1, 0
      %v85 = vcvt.s32.f32 %v83
      %v86 = vcvt.s32.f32 %v84
      %v87 = vadd.f32 %v73, %v85
      %v88 = vadd.f32 %v74, %v86
      %89 = vset.pattern.permute.xlu0 2
      %90 = vperm.xlu0 %89, %v55
      %v91 = vpop.permute.xlu0 %90
      %92 = vset.pattern.permute.xlu0 2
      %93 = vperm.xlu0 %92, %v56
      %v94 = vpop.permute.xlu0 %93
      %vm95 = vcmp.eq.s32.totalorder %v91, %v60
      %vm96 = vcmp.eq.s32.totalorder %v94, %v60
      %v97 = vsel %vm95, 1, 0
      %v98 = vsel %vm96, 1, 0
      %v99 = vcvt.s32.f32 %v97
      %v100 = vcvt.s32.f32 %v98
      %v101 = vadd.f32 %v87, %v99
      %v102 = vadd.f32 %v88, %v100
      %103 = vset.pattern.permute.xlu0 3
      %104 = vperm.xlu0 %103, %v55
      %v105 = vpop.permute.xlu0 %104
      %106 = vset.pattern.permute.xlu0 3
      %107 = vperm.xlu0 %106, %v56
      %v108 = vpop.permute.xlu0 %107
      %vm109 = vcmp.eq.s32.totalorder %v105, %v60
      %vm110 = vcmp.eq.s32.totalorder %v108, %v60
      %v111 = vsel %vm109, 1, 0
      %v112 = vsel %vm110, 1, 0
      %v113 = vcvt.s32.f32 %v111
      %v114 = vcvt.s32.f32 %v112
      %v115 = vadd.f32 %v101, %v113
      %v116 = vadd.f32 %v102, %v114
      %117 = vset.pattern.permute.xlu0 4
      %118 = vperm.xlu0 %117, %v55
      %v119 = vpop.permute.xlu0 %118
      %120 = vset.pattern.permute.xlu0 4
      %121 = vperm.xlu0 %120, %v56
      %v122 = vpop.permute.xlu0 %121
      %vm123 = vcmp.eq.s32.totalorder %v119, %v60
      %vm124 = vcmp.eq.s32.totalorder %v122, %v60
      %v125 = vsel %vm123, 1, 0
      %v126 = vsel %vm124, 1, 0
      %v127 = vcvt.s32.f32 %v125
      %v128 = vcvt.s32.f32 %v126
      %v129 = vadd.f32 %v115, %v127
      %v130 = vadd.f32 %v116, %v128
      %v131 = vld [vmem:[#allocation5] sm:$0xff]
      %v132 = vld [vmem:[#allocation5 + $0x8] sm:$0xff]
      %v133 = vld [vmem:[#allocation5 + $0x10] sm:$0xff]
      %v134 = vld [vmem:[#allocation5 + $0x18] sm:$0xff]
      %v135 = vld [vmem:[#allocation5 + $0x20] sm:$0xff]
      %v136 = vld [vmem:[#allocation5 + $0x28] sm:$0xff]
      %v137 = vld [vmem:[#allocation5 + $0x30] sm:$0xff]
      %v138 = vld [vmem:[#allocation5 + $0x38] sm:$0xff]
      %v139 = vld [vmem:[#allocation5 + $0x40] sm:$0xff]
      %v140 = vld [vmem:[#allocation5 + $0x48] sm:$0xff]
      %v141 = vld [vmem:[#allocation5 + $0x50] sm:$0xff]
      %v142 = vld [vmem:[#allocation5 + $0x58] sm:$0xff]
      %v143 = vld [vmem:[#allocation5 + $0x60] sm:$0xff]
      %v144 = vld [vmem:[#allocation5 + $0x68] sm:$0xff]
      %v145 = vld [vmem:[#allocation5 + $0x70] sm:$0xff]
      %v146 = vld [vmem:[#allocation5 + $0x78] sm:$0xff]
      %v147 = vld [vmem:[#allocation8] sm:$0xff]
      %v148 = vld [vmem:[#allocation8 + $0x8] sm:$0xff]
      %149 = vmatprep.subr.mxu0 0.0
      %v150 = vand.u32 %v131, 4294901760
      %151 = vmatpush1.msra.mxu0 %v150
      %152 = vmatprep.subr.mxu0 0.0
      %v153 = vand.u32 %v132, 4294901760
      %154 = vmatpush1.msra.mxu0 %v153
      %155 = vmatprep.subr.mxu0 0.0
      %v156 = vand.u32 %v133, 4294901760
      %157 = vmatpush1.msra.mxu0 %v156
      %158 = vmatprep.subr.mxu0 0.0
      %v159 = vand.u32 %v134, 4294901760
      %160 = vmatpush1.msra.mxu0 %v159
      %161 = vmatprep.subr.mxu0 0.0
      %v162 = vand.u32 %v135, 4294901760
      %163 = vmatpush1.msra.mxu0 %v162
      %164 = vmatprep.subr.mxu0 0.0
      %v165 = vand.u32 %v136, 4294901760
      %166 = vmatpush1.msra.mxu0 %v165
      %167 = vmatprep.subr.mxu0 0.0
      %v168 = vand.u32 %v137, 4294901760
      %169 = vmatpush1.msra.mxu0 %v168
      %170 = vmatprep.subr.mxu0 0.0
      %v171 = vand.u32 %v138, 4294901760
      %172 = vmatpush1.msra.mxu0 %v171
      %173 = vmatprep.subr.mxu0 0.0
      %v174 = vand.u32 %v139, 4294901760
      %175 = vmatpush1.msra.mxu0 %v174
      %176 = vmatprep.subr.mxu0 0.0
      %v177 = vand.u32 %v140, 4294901760
      %178 = vmatpush1.msra.mxu0 %v177
      %179 = vmatprep.subr.mxu0 0.0
      %v180 = vand.u32 %v141, 4294901760
      %181 = vmatpush1.msra.mxu0 %v180
      %182 = vmatprep.subr.mxu0 0.0
      %v183 = vand.u32 %v142, 4294901760
      %184 = vmatpush1.msra.mxu0 %v183
      %185 = vmatprep.subr.mxu0 0.0
      %v186 = vand.u32 %v143, 4294901760
      %187 = vmatpush1.msra.mxu0 %v186
      %188 = vmatprep.subr.mxu0 0.0
      %v189 = vand.u32 %v144, 4294901760
      %190 = vmatpush1.msra.mxu0 %v189
      %191 = vmatprep.subr.mxu0 0.0
      %v192 = vand.u32 %v145, 4294901760
      %193 = vmatpush1.msra.mxu0 %v192
      %194 = vmatprep.subr.mxu0 0.0
      %v195 = vand.u32 %v146, 4294901760
      %196 = vmatpush1.msra.mxu0 %v195
      %197 = vmatprep.subr.mxu0 0.0
      %198 = vmatpush1.msra.mxu0 0.0
      %199 = vmatprep.subr.mxu0 0.0
      %200 = vmatpush1.msra.mxu0 0.0
      %201 = vmatprep.subr.mxu0 0.0
      %202 = vmatpush1.msra.mxu0 0.0
      %203 = vmatprep.subr.mxu0 0.0
      %204 = vmatpush1.msra.mxu0 0.0
      %205 = vmatprep.subr.mxu0 0.0
      %206 = vmatpush1.msra.mxu0 0.0
      %207 = vmatprep.subr.mxu0 0.0
      %208 = vmatpush1.msra.mxu0 0.0
      %209 = vmatprep.subr.mxu0 0.0
      %210 = vmatpush1.msra.mxu0 0.0
      %211 = vmatprep.subr.mxu0 0.0
      %212 = vmatpush1.msra.mxu0 0.0
      %213 = vmatprep.subr.mxu0 0.0
      %214 = vmatpush1.msra.mxu0 0.0
      %215 = vmatprep.subr.mxu0 0.0
      %216 = vmatpush1.msra.mxu0 0.0
      %217 = vmatprep.subr.mxu0 0.0
      %218 = vmatpush1.msra.mxu0 0.0
      %219 = vmatprep.subr.mxu0 0.0
      %220 = vmatpush1.msra.mxu0 0.0
      %221 = vmatprep.subr.mxu0 0.0
      %222 = vmatpush1.msra.mxu0 0.0
      %223 = vmatprep.subr.mxu0 0.0
      %224 = vmatpush1.msra.mxu0 0.0
      %225 = vmatprep.subr.mxu0 0.0
      %226 = vmatpush1.msra.mxu0 0.0
      %227 = vmatprep.subr.mxu0 0.0
      %228 = vmatpush1.msra.mxu0 0.0
      %229 = vmatprep.mubr.f32.mxu0 0.0
      %v230 = vand.u32 %v129, 4294901760
      %v231 = vsub.f32 %v129, %v230
      %v232 = vand.u32 %v231, 4294901760
      %v233 = vsub.f32 %v231, %v232
      %v234 = vand.u32 %v233, 4294901760
      %235 = vmatmul.mubr.f32.gmra.mrb[0].mxu0 %v234
      %v236 = vpop.f32.mrb[0].mxu0
      %v237 = vadd.f32 0.0, %v236
      %v238 = vpop.f32.mrb[0].mxu0
      %239 = vmatprep.mubr.f32.mxu0 0.0
      %v240 = vand.u32 %v130, 4294901760
      %v241 = vsub.f32 %v130, %v240
      %v242 = vand.u32 %v241, 4294901760
      %v243 = vsub.f32 %v241, %v242
      %v244 = vand.u32 %v243, 4294901760
      %245 = vmatmul.mubr.f32.gmra.mrb[0].mxu0 %v244
      %v246 = vpop.f32.mrb[0].mxu0
      %v247 = vadd.f32 0.0, %v246
      %v248 = vpop.f32.mrb[0].mxu0
      %249 = vdwg.mxu0
      %250 = vmatprep.subr.mxu0 0.0
      %v251 = vand.u32 %v131, 4294901760
      %v252 = vsub.f32 %v131, %v251
      %v253 = vand.u32 %v252, 4294901760
      %v254 = vsub.f32 %v252, %v253
      %v255 = vand.u32 %v254, 4294901760
      %256 = vmatpush1.msra.mxu0 %v255
      %257 = vmatprep.subr.mxu0 0.0
      %v258 = vand.u32 %v132, 4294901760
      %v259 = vsub.f32 %v132, %v258
      %v260 = vand.u32 %v259, 4294901760
      %v261 = vsub.f32 %v259, %v260
      %v262 = vand.u32 %v261, 4294901760
      %263 = vmatpush1.msra.mxu0 %v262
      %264 = vmatprep.subr.mxu0 0.0
      %v265 = vand.u32 %v133, 4294901760
      %v266 = vsub.f32 %v133, %v265
      %v267 = vand.u32 %v266, 4294901760
      %v268 = vsub.f32 %v266, %v267
      %v269 = vand.u32 %v268, 4294901760
      %270 = vmatpush1.msra.mxu0 %v269
      %271 = vmatprep.subr.mxu0 0.0
      %v272 = vand.u32 %v134, 4294901760
      %v273 = vsub.f32 %v134, %v272
      %v274 = vand.u32 %v273, 4294901760
      %v275 = vsub.f32 %v273, %v274
      %v276 = vand.u32 %v275, 4294901760
      %277 = vmatpush1.msra.mxu0 %v276
      %278 = vmatprep.subr.mxu0 0.0
      %v279 = vand.u32 %v135, 4294901760
      %v280 = vsub.f32 %v135, %v279
      %v281 = vand.u32 %v280, 4294901760
      %v282 = vsub.f32 %v280, %v281
      %v283 = vand.u32 %v282, 4294901760
      %284 = vmatpush1.msra.mxu0 %v283
      %285 = vmatprep.subr.mxu0 0.0
      %v286 = vand.u32 %v136, 4294901760
      %v287 = vsub.f32 %v136, %v286
      %v288 = vand.u32 %v287, 4294901760
      %v289 = vsub.f32 %v287, %v288
      %v290 = vand.u32 %v289, 4294901760
      %291 = vmatpush1.msra.mxu0 %v290
      %292 = vmatprep.subr.mxu0 0.0
      %v293 = vand.u32 %v137, 4294901760
      %v294 = vsub.f32 %v137, %v293
      %v295 = vand.u32 %v294, 4294901760
      %v296 = vsub.f32 %v294, %v295
      %v297 = vand.u32 %v296, 4294901760
      %298 = vmatpush1.msra.mxu0 %v297
      %299 = vmatprep.subr.mxu0 0.0
      %v300 = vand.u32 %v138, 4294901760
      %v301 = vsub.f32 %v138, %v300
      %v302 = vand.u32 %v301, 4294901760
      %v303 = vsub.f32 %v301, %v302
      %v304 = vand.u32 %v303, 4294901760
      %305 = vmatpush1.msra.mxu0 %v304
      %306 = vmatprep.subr.mxu0 0.0
      %v307 = vand.u32 %v139, 4294901760
      %v308 = vsub.f32 %v139, %v307
      %v309 = vand.u32 %v308, 4294901760
      %v310 = vsub.f32 %v308, %v309
      %v311 = vand.u32 %v310, 4294901760
      %312 = vmatpush1.msra.mxu0 %v311
      %313 = vmatprep.subr.mxu0 0.0
      %v314 = vand.u32 %v140, 4294901760
      %v315 = vsub.f32 %v140, %v314
      %v316 = vand.u32 %v315, 4294901760
      %v317 = vsub.f32 %v315, %v316
      %v318 = vand.u32 %v317, 4294901760
      %319 = vmatpush1.msra.mxu0 %v318
      %320 = vmatprep.subr.mxu0 0.0
      %v321 = vand.u32 %v141, 4294901760
      %v322 = vsub.f32 %v141, %v321
      %v323 = vand.u32 %v322, 4294901760
      %v324 = vsub.f32 %v322, %v323
      %v325 = vand.u32 %v324, 4294901760
      %326 = vmatpush1.msra.mxu0 %v325
      %327 = vmatprep.subr.mxu0 0.0
      %v328 = vand.u32 %v142, 4294901760
      %v329 = vsub.f32 %v142, %v328
      %v330 = vand.u32 %v329, 4294901760
      %v331 = vsub.f32 %v329, %v330
      %v332 = vand.u32 %v331, 4294901760
      %333 = vmatpush1.msra.mxu0 %v332
      %334 = vmatprep.subr.mxu0 0.0
      %v335 = vand.u32 %v143, 4294901760
      %v336 = vsub.f32 %v143, %v335
      %v337 = vand.u32 %v336, 4294901760
      %v338 = vsub.f32 %v336, %v337
      %v339 = vand.u32 %v338, 4294901760
      %340 = vmatpush1.msra.mxu0 %v339
      %341 = vmatprep.subr.mxu0 0.0
      %v342 = vand.u32 %v144, 4294901760
      %v343 = vsub.f32 %v144, %v342
      %v344 = vand.u32 %v343, 4294901760
      %v345 = vsub.f32 %v343, %v344
      %v346 = vand.u32 %v345, 4294901760
      %347 = vmatpush1.msra.mxu0 %v346
      %348 = vmatprep.subr.mxu0 0.0
      %v349 = vand.u32 %v145, 4294901760
      %v350 = vsub.f32 %v145, %v349
      %v351 = vand.u32 %v350, 4294901760
      %v352 = vsub.f32 %v350, %v351
      %v353 = vand.u32 %v352, 4294901760
      %354 = vmatpush1.msra.mxu0 %v353
      %355 = vmatprep.subr.mxu0 0.0
      %v356 = vand.u32 %v146, 4294901760
      %v357 = vsub.f32 %v146, %v356
      %v358 = vand.u32 %v357, 4294901760
      %v359 = vsub.f32 %v357, %v358
      %v360 = vand.u32 %v359, 4294901760
      %361 = vmatpush1.msra.mxu0 %v360
      %362 = vmatprep.subr.mxu0 0.0
      %363 = vmatpush1.msra.mxu0 0.0
      %364 = vmatprep.subr.mxu0 0.0
      %365 = vmatpush1.msra.mxu0 0.0
      %366 = vmatprep.subr.mxu0 0.0
      %367 = vmatpush1.msra.mxu0 0.0
      %368 = vmatprep.subr.mxu0 0.0
      %369 = vmatpush1.msra.mxu0 0.0
      %370 = vmatprep.subr.mxu0 0.0
      %371 = vmatpush1.msra.mxu0 0.0
      %372 = vmatprep.subr.mxu0 0.0
      %373 = vmatpush1.msra.mxu0 0.0
      %374 = vmatprep.subr.mxu0 0.0
      %375 = vmatpush1.msra.mxu0 0.0
      %376 = vmatprep.subr.mxu0 0.0
      %377 = vmatpush1.msra.mxu0 0.0
      %378 = vmatprep.subr.mxu0 0.0
      %379 = vmatpush1.msra.mxu0 0.0
      %380 = vmatprep.subr.mxu0 0.0
      %381 = vmatpush1.msra.mxu0 0.0
      %382 = vmatprep.subr.mxu0 0.0
      %383 = vmatpush1.msra.mxu0 0.0
      %384 = vmatprep.subr.mxu0 0.0
      %385 = vmatpush1.msra.mxu0 0.0
      %386 = vmatprep.subr.mxu0 0.0
      %387 = vmatpush1.msra.mxu0 0.0
      %388 = vmatprep.subr.mxu0 0.0
      %389 = vmatpush1.msra.mxu0 0.0
      %390 = vmatprep.subr.mxu0 0.0
      %391 = vmatpush1.msra.mxu0 0.0
      %392 = vmatprep.subr.mxu0 0.0
      %393 = vmatpush1.msra.mxu0 0.0
      %394 = vmatprep.mubr.f32.mxu0 0.0
      %v395 = vand.u32 %v129, 4294901760
      %396 = vmatmul.mubr.f32.gmra.mrb[0].mxu0 %v395
      %v397 = vpop.f32.mrb[0].mxu0
      %v398 = vadd.f32 %v237, %v397
      %v399 = vpop.f32.mrb[0].mxu0
      %400 = vmatprep.mubr.f32.mxu0 0.0
      %v401 = vand.u32 %v130, 4294901760
      %402 = vmatmul.mubr.f32.gmra.mrb[0].mxu0 %v401
      %v403 = vpop.f32.mrb[0].mxu0
      %v404 = vadd.f32 %v247, %v403
      %v405 = vpop.f32.mrb[0].mxu0
      %406 = vdwg.mxu0
      %407 = vmatprep.subr.mxu0 0.0
      %v408 = vand.u32 %v131, 4294901760
      %v409 = vsub.f32 %v131, %v408
      %410 = vmatpush1.msra.mxu0 %v409
      %411 = vmatprep.subr.mxu0 0.0
      %v412 = vand.u32 %v132, 4294901760
      %v413 = vsub.f32 %v132, %v412
      %414 = vmatpush1.msra.mxu0 %v413
      %415 = vmatprep.subr.mxu0 0.0
      %v416 = vand.u32 %v133, 4294901760
      %v417 = vsub.f32 %v133, %v416
      %418 = vmatpush1.msra.mxu0 %v417
      %419 = vmatprep.subr.mxu0 0.0
      %v420 = vand.u32 %v134, 4294901760
      %v421 = vsub.f32 %v134, %v420
      %422 = vmatpush1.msra.mxu0 %v421
      %423 = vmatprep.subr.mxu0 0.0
      %v424 = vand.u32 %v135, 4294901760
      %v425 = vsub.f32 %v135, %v424
      %426 = vmatpush1.msra.mxu0 %v425
      %427 = vmatprep.subr.mxu0 0.0
      %v428 = vand.u32 %v136, 4294901760
      %v429 = vsub.f32 %v136, %v428
      %430 = vmatpush1.msra.mxu0 %v429
      %431 = vmatprep.subr.mxu0 0.0
      %v432 = vand.u32 %v137, 4294901760
      %v433 = vsub.f32 %v137, %v432
      %434 = vmatpush1.msra.mxu0 %v433
      %435 = vmatprep.subr.mxu0 0.0
      %v436 = vand.u32 %v138, 4294901760
      %v437 = vsub.f32 %v138, %v436
      %438 = vmatpush1.msra.mxu0 %v437
      %439 = vmatprep.subr.mxu0 0.0
      %v440 = vand.u32 %v139, 4294901760
      %v441 = vsub.f32 %v139, %v440
      %442 = vmatpush1.msra.mxu0 %v441
      %443 = vmatprep.subr.mxu0 0.0
      %v444 = vand.u32 %v140, 4294901760
      %v445 = vsub.f32 %v140, %v444
      %446 = vmatpush1.msra.mxu0 %v445
      %447 = vmatprep.subr.mxu0 0.0
      %v448 = vand.u32 %v141, 4294901760
      %v449 = vsub.f32 %v141, %v448
      %450 = vmatpush1.msra.mxu0 %v449
      %451 = vmatprep.subr.mxu0 0.0
      %v452 = vand.u32 %v142, 4294901760
      %v453 = vsub.f32 %v142, %v452
      %454 = vmatpush1.msra.mxu0 %v453
      %455 = vmatprep.subr.mxu0 0.0
      %v456 = vand.u32 %v143, 4294901760
      %v457 = vsub.f32 %v143, %v456
      %458 = vmatpush1.msra.mxu0 %v457
      %459 = vmatprep.subr.mxu0 0.0
      %v460 = vand.u32 %v144, 4294901760
      %v461 = vsub.f32 %v144, %v460
      %462 = vmatpush1.msra.mxu0 %v461
      %463 = vmatprep.subr.mxu0 0.0
      %v464 = vand.u32 %v145, 4294901760
      %v465 = vsub.f32 %v145, %v464
      %466 = vmatpush1.msra.mxu0 %v465
      %467 = vmatprep.subr.mxu0 0.0
      %v468 = vand.u32 %v146, 4294901760
      %v469 = vsub.f32 %v146, %v468
      %470 = vmatpush1.msra.mxu0 %v469
      %471 = vmatprep.subr.mxu0 0.0
      %472 = vmatpush1.msra.mxu0 0.0
      %473 = vmatprep.subr.mxu0 0.0
      %474 = vmatpush1.msra.mxu0 0.0
      %475 = vmatprep.subr.mxu0 0.0
      %476 = vmatpush1.msra.mxu0 0.0
      %477 = vmatprep.subr.mxu0 0.0
      %478 = vmatpush1.msra.mxu0 0.0
      %479 = vmatprep.subr.mxu0 0.0
      %480 = vmatpush1.msra.mxu0 0.0
      %481 = vmatprep.subr.mxu0 0.0
      %482 = vmatpush1.msra.mxu0 0.0
      %483 = vmatprep.subr.mxu0 0.0
      %484 = vmatpush1.msra.mxu0 0.0
      %485 = vmatprep.subr.mxu0 0.0
      %486 = vmatpush1.msra.mxu0 0.0
      %487 = vmatprep.subr.mxu0 0.0
      %488 = vmatpush1.msra.mxu0 0.0
      %489 = vmatprep.subr.mxu0 0.0
      %490 = vmatpush1.msra.mxu0 0.0
      %491 = vmatprep.subr.mxu0 0.0
      %492 = vmatpush1.msra.mxu0 0.0
      %493 = vmatprep.subr.mxu0 0.0
      %494 = vmatpush1.msra.mxu0 0.0
      %495 = vmatprep.subr.mxu0 0.0
      %496 = vmatpush1.msra.mxu0 0.0
      %497 = vmatprep.subr.mxu0 0.0
      %498 = vmatpush1.msra.mxu0 0.0
      %499 = vmatprep.subr.mxu0 0.0
      %500 = vmatpush1.msra.mxu0 0.0
      %501 = vmatprep.subr.mxu0 0.0
      %502 = vmatpush1.msra.mxu0 0.0
      %503 = vmatprep.mubr.f32.mxu0 0.0
      %v504 = vand.u32 %v129, 4294901760
      %v505 = vsub.f32 %v129, %v504
      %506 = vmatmul.mubr.f32.gmra.mrb[0].mxu0 %v505
      %v507 = vpop.f32.mrb[0].mxu0
      %v508 = vadd.f32 %v398, %v507
      %v509 = vpop.f32.mrb[0].mxu0
      %510 = vmatprep.mubr.f32.mxu0 0.0
      %v511 = vand.u32 %v130, 4294901760
      %v512 = vsub.f32 %v130, %v511
      %513 = vmatmul.mubr.f32.gmra.mrb[0].mxu0 %v512
      %v514 = vpop.f32.mrb[0].mxu0
      %v515 = vadd.f32 %v404, %v514
      %v516 = vpop.f32.mrb[0].mxu0
      %517 = vdwg.mxu0
      %518 = vmatprep.subr.mxu0 0.0
      %v519 = vand.u32 %v131, 4294901760
      %520 = vmatpush1.msra.mxu0 %v519
      %521 = vmatprep.subr.mxu0 0.0
      %v522 = vand.u32 %v132, 4294901760
      %523 = vmatpush1.msra.mxu0 %v522
      %524 = vmatprep.subr.mxu0 0.0
      %v525 = vand.u32 %v133, 4294901760
      %526 = vmatpush1.msra.mxu0 %v525
      %527 = vmatprep.subr.mxu0 0.0
      %v528 = vand.u32 %v134, 4294901760
      %529 = vmatpush1.msra.mxu0 %v528
      %530 = vmatprep.subr.mxu0 0.0
      %v531 = vand.u32 %v135, 4294901760
      %532 = vmatpush1.msra.mxu0 %v531
      %533 = vmatprep.subr.mxu0 0.0
      %v534 = vand.u32 %v136, 4294901760
      %535 = vmatpush1.msra.mxu0 %v534
      %536 = vmatprep.subr.mxu0 0.0
      %v537 = vand.u32 %v137, 4294901760
      %538 = vmatpush1.msra.mxu0 %v537
      %539 = vmatprep.subr.mxu0 0.0
      %v540 = vand.u32 %v138, 4294901760
      %541 = vmatpush1.msra.mxu0 %v540
      %542 = vmatprep.subr.mxu0 0.0
      %v543 = vand.u32 %v139, 4294901760
      %544 = vmatpush1.msra.mxu0 %v543
      %545 = vmatprep.subr.mxu0 0.0
      %v546 = vand.u32 %v140, 4294901760
      %547 = vmatpush1.msra.mxu0 %v546
      %548 = vmatprep.subr.mxu0 0.0
      %v549 = vand.u32 %v141, 4294901760
      %550 = vmatpush1.msra.mxu0 %v549
      %551 = vmatprep.subr.mxu0 0.0
      %v552 = vand.u32 %v142, 4294901760
      %553 = vmatpush1.msra.mxu0 %v552
      %554 = vmatprep.subr.mxu0 0.0
      %v555 = vand.u32 %v143, 4294901760
      %556 = vmatpush1.msra.mxu0 %v555
      %557 = vmatprep.subr.mxu0 0.0
      %v558 = vand.u32 %v144, 4294901760
      %559 = vmatpush1.msra.mxu0 %v558
      %560 = vmatprep.subr.mxu0 0.0
      %v561 = vand.u32 %v145, 4294901760
      %562 = vmatpush1.msra.mxu0 %v561
      %563 = vmatprep.subr.mxu0 0.0
      %v564 = vand.u32 %v146, 4294901760
      %565 = vmatpush1.msra.mxu0 %v564
      %566 = vmatprep.subr.mxu0 0.0
      %567 = vmatpush1.msra.mxu0 0.0
      %568 = vmatprep.subr.mxu0 0.0
      %569 = vmatpush1.msra.mxu0 0.0
      %570 = vmatprep.subr.mxu0 0.0
      %571 = vmatpush1.msra.mxu0 0.0
      %572 = vmatprep.subr.mxu0 0.0
      %573 = vmatpush1.msra.mxu0 0.0
      %574 = vmatprep.subr.mxu0 0.0
      %575 = vmatpush1.msra.mxu0 0.0
      %576 = vmatprep.subr.mxu0 0.0
      %577 = vmatpush1.msra.mxu0 0.0
      %578 = vmatprep.subr.mxu0 0.0
      %579 = vmatpush1.msra.mxu0 0.0
      %580 = vmatprep.subr.mxu0 0.0
      %581 = vmatpush1.msra.mxu0 0.0
      %582 = vmatprep.subr.mxu0 0.0
      %583 = vmatpush1.msra.mxu0 0.0
      %584 = vmatprep.subr.mxu0 0.0
      %585 = vmatpush1.msra.mxu0 0.0
      %586 = vmatprep.subr.mxu0 0.0
      %587 = vmatpush1.msra.mxu0 0.0
      %588 = vmatprep.subr.mxu0 0.0
      %589 = vmatpush1.msra.mxu0 0.0
      %590 = vmatprep.subr.mxu0 0.0
      %591 = vmatpush1.msra.mxu0 0.0
      %592 = vmatprep.subr.mxu0 0.0
      %593 = vmatpush1.msra.mxu0 0.0
      %594 = vmatprep.subr.mxu0 0.0
      %595 = vmatpush1.msra.mxu0 0.0
      %596 = vmatprep.subr.mxu0 0.0
      %597 = vmatpush1.msra.mxu0 0.0
      %598 = vmatprep.mubr.f32.mxu0 0.0
      %v599 = vand.u32 %v129, 4294901760
      %v600 = vsub.f32 %v129, %v599
      %v601 = vand.u32 %v600, 4294901760
      %602 = vmatmul.mubr.f32.gmra.mrb[0].mxu0 %v601
      %v603 = vpop.f32.mrb[0].mxu0
      %v604 = vadd.f32 %v508, %v603
      %v605 = vpop.f32.mrb[0].mxu0
      %606 = vmatprep.mubr.f32.mxu0 0.0
      %v607 = vand.u32 %v130, 4294901760
      %v608 = vsub.f32 %v130, %v607
      %v609 = vand.u32 %v608, 4294901760
      %610 = vmatmul.mubr.f32.gmra.mrb[0].mxu0 %v609
      %v611 = vpop.f32.mrb[0].mxu0
      %v612 = vadd.f32 %v515, %v611
      %v613 = vpop.f32.mrb[0].mxu0
      %614 = vdwg.mxu0
      %615 = vmatprep.subr.mxu0 0.0
      %v616 = vand.u32 %v131, 4294901760
      %v617 = vsub.f32 %v131, %v616
      %v618 = vand.u32 %v617, 4294901760
      %619 = vmatpush1.msra.mxu0 %v618
      %620 = vmatprep.subr.mxu0 0.0
      %v621 = vand.u32 %v132, 4294901760
      %v622 = vsub.f32 %v132, %v621
      %v623 = vand.u32 %v622, 4294901760
      %624 = vmatpush1.msra.mxu0 %v623
      %625 = vmatprep.subr.mxu0 0.0
      %v626 = vand.u32 %v133, 4294901760
      %v627 = vsub.f32 %v133, %v626
      %v628 = vand.u32 %v627, 4294901760
      %629 = vmatpush1.msra.mxu0 %v628
      %630 = vmatprep.subr.mxu0 0.0
      %v631 = vand.u32 %v134, 4294901760
      %v632 = vsub.f32 %v134, %v631
      %v633 = vand.u32 %v632, 4294901760
      %634 = vmatpush1.msra.mxu0 %v633
      %635 = vmatprep.subr.mxu0 0.0
      %v636 = vand.u32 %v135, 4294901760
      %v637 = vsub.f32 %v135, %v636
      %v638 = vand.u32 %v637, 4294901760
      %639 = vmatpush1.msra.mxu0 %v638
      %640 = vmatprep.subr.mxu0 0.0
      %v641 = vand.u32 %v136, 4294901760
      %v642 = vsub.f32 %v136, %v641
      %v643 = vand.u32 %v642, 4294901760
      %644 = vmatpush1.msra.mxu0 %v643
      %645 = vmatprep.subr.mxu0 0.0
      %v646 = vand.u32 %v137, 4294901760
      %v647 = vsub.f32 %v137, %v646
      %v648 = vand.u32 %v647, 4294901760
      %649 = vmatpush1.msra.mxu0 %v648
      %650 = vmatprep.subr.mxu0 0.0
      %v651 = vand.u32 %v138, 4294901760
      %v652 = vsub.f32 %v138, %v651
      %v653 = vand.u32 %v652, 4294901760
      %654 = vmatpush1.msra.mxu0 %v653
      %655 = vmatprep.subr.mxu0 0.0
      %v656 = vand.u32 %v139, 4294901760
      %v657 = vsub.f32 %v139, %v656
      %v658 = vand.u32 %v657, 4294901760
      %659 = vmatpush1.msra.mxu0 %v658
      %660 = vmatprep.subr.mxu0 0.0
      %v661 = vand.u32 %v140, 4294901760
      %v662 = vsub.f32 %v140, %v661
      %v663 = vand.u32 %v662, 4294901760
      %664 = vmatpush1.msra.mxu0 %v663
      %665 = vmatprep.subr.mxu0 0.0
      %v666 = vand.u32 %v141, 4294901760
      %v667 = vsub.f32 %v141, %v666
      %v668 = vand.u32 %v667, 4294901760
      %669 = vmatpush1.msra.mxu0 %v668
      %670 = vmatprep.subr.mxu0 0.0
      %v671 = vand.u32 %v142, 4294901760
      %v672 = vsub.f32 %v142, %v671
      %v673 = vand.u32 %v672, 4294901760
      %674 = vmatpush1.msra.mxu0 %v673
      %675 = vmatprep.subr.mxu0 0.0
      %v676 = vand.u32 %v143, 4294901760
      %v677 = vsub.f32 %v143, %v676
      %v678 = vand.u32 %v677, 4294901760
      %679 = vmatpush1.msra.mxu0 %v678
      %680 = vmatprep.subr.mxu0 0.0
      %v681 = vand.u32 %v144, 4294901760
      %v682 = vsub.f32 %v144, %v681
      %v683 = vand.u32 %v682, 4294901760
      %684 = vmatpush1.msra.mxu0 %v683
      %685 = vmatprep.subr.mxu0 0.0
      %v686 = vand.u32 %v145, 4294901760
      %v687 = vsub.f32 %v145, %v686
      %v688 = vand.u32 %v687, 4294901760
      %689 = vmatpush1.msra.mxu0 %v688
      %690 = vmatprep.subr.mxu0 0.0
      %v691 = vand.u32 %v146, 4294901760
      %v692 = vsub.f32 %v146, %v691
      %v693 = vand.u32 %v692, 4294901760
      %694 = vmatpush1.msra.mxu0 %v693
      %695 = vmatprep.subr.mxu0 0.0
      %696 = vmatpush1.msra.mxu0 0.0
      %697 = vmatprep.subr.mxu0 0.0
      %698 = vmatpush1.msra.mxu0 0.0
      %699 = vmatprep.subr.mxu0 0.0
      %700 = vmatpush1.msra.mxu0 0.0
      %701 = vmatprep.subr.mxu0 0.0
      %702 = vmatpush1.msra.mxu0 0.0
      %703 = vmatprep.subr.mxu0 0.0
      %704 = vmatpush1.msra.mxu0 0.0
      %705 = vmatprep.subr.mxu0 0.0
      %706 = vmatpush1.msra.mxu0 0.0
      %707 = vmatprep.subr.mxu0 0.0
      %708 = vmatpush1.msra.mxu0 0.0
      %709 = vmatprep.subr.mxu0 0.0
      %710 = vmatpush1.msra.mxu0 0.0
      %711 = vmatprep.subr.mxu0 0.0
      %712 = vmatpush1.msra.mxu0 0.0
      %713 = vmatprep.subr.mxu0 0.0
      %714 = vmatpush1.msra.mxu0 0.0
      %715 = vmatprep.subr.mxu0 0.0
      %716 = vmatpush1.msra.mxu0 0.0
      %717 = vmatprep.subr.mxu0 0.0
      %718 = vmatpush1.msra.mxu0 0.0
      %719 = vmatprep.subr.mxu0 0.0
      %720 = vmatpush1.msra.mxu0 0.0
      %721 = vmatprep.subr.mxu0 0.0
      %722 = vmatpush1.msra.mxu0 0.0
      %723 = vmatprep.subr.mxu0 0.0
      %724 = vmatpush1.msra.mxu0 0.0
      %725 = vmatprep.subr.mxu0 0.0
      %726 = vmatpush1.msra.mxu0 0.0
      %727 = vmatprep.mubr.f32.mxu0 0.0
      %v728 = vand.u32 %v129, 4294901760
      %729 = vmatmul.mubr.f32.gmra.mrb[0].mxu0 %v728
      %v730 = vpop.f32.mrb[0].mxu0
      %v731 = vadd.f32 %v604, %v730
      %v732 = vpop.f32.mrb[0].mxu0
      %733 = vmatprep.mubr.f32.mxu0 0.0
      %v734 = vand.u32 %v130, 4294901760
      %735 = vmatmul.mubr.f32.gmra.mrb[0].mxu0 %v734
      %v736 = vpop.f32.mrb[0].mxu0
      %v737 = vadd.f32 %v612, %v736
      %v738 = vpop.f32.mrb[0].mxu0
      %739 = vdwg.mxu0
      %740 = vmatprep.subr.mxu0 0.0
      %v741 = vand.u32 %v131, 4294901760
      %742 = vmatpush1.msra.mxu0 %v741
      %743 = vmatprep.subr.mxu0 0.0
      %v744 = vand.u32 %v132, 4294901760
      %745 = vmatpush1.msra.mxu0 %v744
      %746 = vmatprep.subr.mxu0 0.0
      %v747 = vand.u32 %v133, 4294901760
      %748 = vmatpush1.msra.mxu0 %v747
      %749 = vmatprep.subr.mxu0 0.0
      %v750 = vand.u32 %v134, 4294901760
      %751 = vmatpush1.msra.mxu0 %v750
      %752 = vmatprep.subr.mxu0 0.0
      %v753 = vand.u32 %v135, 4294901760
      %754 = vmatpush1.msra.mxu0 %v753
      %755 = vmatprep.subr.mxu0 0.0
      %v756 = vand.u32 %v136, 4294901760
      %757 = vmatpush1.msra.mxu0 %v756
      %758 = vmatprep.subr.mxu0 0.0
      %v759 = vand.u32 %v137, 4294901760
      %760 = vmatpush1.msra.mxu0 %v759
      %761 = vmatprep.subr.mxu0 0.0
      %v762 = vand.u32 %v138, 4294901760
      %763 = vmatpush1.msra.mxu0 %v762
      %764 = vmatprep.subr.mxu0 0.0
      %v765 = vand.u32 %v139, 4294901760
      %766 = vmatpush1.msra.mxu0 %v765
      %767 = vmatprep.subr.mxu0 0.0
      %v768 = vand.u32 %v140, 4294901760
      %769 = vmatpush1.msra.mxu0 %v768
      %770 = vmatprep.subr.mxu0 0.0
      %v771 = vand.u32 %v141, 4294901760
      %772 = vmatpush1.msra.mxu0 %v771
      %773 = vmatprep.subr.mxu0 0.0
      %v774 = vand.u32 %v142, 4294901760
      %775 = vmatpush1.msra.mxu0 %v774
      %776 = vmatprep.subr.mxu0 0.0
      %v777 = vand.u32 %v143, 4294901760
      %778 = vmatpush1.msra.mxu0 %v777
      %779 = vmatprep.subr.mxu0 0.0
      %v780 = vand.u32 %v144, 4294901760
      %781 = vmatpush1.msra.mxu0 %v780
      %782 = vmatprep.subr.mxu0 0.0
      %v783 = vand.u32 %v145, 4294901760
      %784 = vmatpush1.msra.mxu0 %v783
      %785 = vmatprep.subr.mxu0 0.0
      %v786 = vand.u32 %v146, 4294901760
      %787 = vmatpush1.msra.mxu0 %v786
      %788 = vmatprep.subr.mxu0 0.0
      %789 = vmatpush1.msra.mxu0 0.0
      %790 = vmatprep.subr.mxu0 0.0
      %791 = vmatpush1.msra.mxu0 0.0
      %792 = vmatprep.subr.mxu0 0.0
      %793 = vmatpush1.msra.mxu0 0.0
      %794 = vmatprep.subr.mxu0 0.0
      %795 = vmatpush1.msra.mxu0 0.0
      %796 = vmatprep.subr.mxu0 0.0
      %797 = vmatpush1.msra.mxu0 0.0
      %798 = vmatprep.subr.mxu0 0.0
      %799 = vmatpush1.msra.mxu0 0.0
      %800 = vmatprep.subr.mxu0 0.0
      %801 = vmatpush1.msra.mxu0 0.0
      %802 = vmatprep.subr.mxu0 0.0
      %803 = vmatpush1.msra.mxu0 0.0
      %804 = vmatprep.subr.mxu0 0.0
      %805 = vmatpush1.msra.mxu0 0.0
      %806 = vmatprep.subr.mxu0 0.0
      %807 = vmatpush1.msra.mxu0 0.0
      %808 = vmatprep.subr.mxu0 0.0
      %809 = vmatpush1.msra.mxu0 0.0
      %810 = vmatprep.subr.mxu0 0.0
      %811 = vmatpush1.msra.mxu0 0.0
      %812 = vmatprep.subr.mxu0 0.0
      %813 = vmatpush1.msra.mxu0 0.0
      %814 = vmatprep.subr.mxu0 0.0
      %815 = vmatpush1.msra.mxu0 0.0
      %816 = vmatprep.subr.mxu0 0.0
      %817 = vmatpush1.msra.mxu0 0.0
      %818 = vmatprep.subr.mxu0 0.0
      %819 = vmatpush1.msra.mxu0 0.0
      %820 = vmatprep.mubr.f32.mxu0 0.0
      %v821 = vand.u32 %v129, 4294901760
      %822 = vmatmul.mubr.f32.gmra.mrb[0].mxu0 %v821
      %v823 = vpop.f32.mrb[0].mxu0
      %v824 = vadd.f32 %v731, %v823
      %v825 = vpop.f32.mrb[0].mxu0
      %826 = vmatprep.mubr.f32.mxu0 0.0
      %v827 = vand.u32 %v130, 4294901760
      %828 = vmatmul.mubr.f32.gmra.mrb[0].mxu0 %v827
      %v829 = vpop.f32.mrb[0].mxu0
      %v830 = vadd.f32 %v737, %v829
      %v831 = vpop.f32.mrb[0].mxu0
      %832 = vdwg.mxu0
      %v833 = vadd.f32 %v147, %v824
      %v834 = vadd.f32 %v148, %v830
      %835 = vst [vmem:[#allocation8] sm:$0xff] %v833
      %836 = vst [vmem:[#allocation8 + $0x8] sm:$0xff] %v834
    $region25: #{tpu_custom_call.1} parent=1 // pred_fallthru
      _
    // Predicated region
    $region26: #{tpu_custom_call.1} parent=1 // pred_check
      %p837 = pneg %p41
    $region27: #{tpu_custom_call.1} parent=1 // pred_check_branch
      %839 = sbr.rel (%p837) target = $region29
    $region28: #{tpu_custom_call.1} parent=1 // pred_region
      %v840 = vld [vmem:[#allocation8] sm:$0xff]
      %v841 = vld [vmem:[#allocation8 + $0x8] sm:$0xff]
      %v842 = vld [vmem:[%s3] sm:$0xff]
      %v843 = vld [vmem:[%s3 + $0x8] sm:$0xff]
      %v844 = vmax.f32 %v842, 1.0
      %v845 = vmax.f32 %v843, 1.0
      %847 = vset.pattern.permute.xlu0 0
      %848 = vperm.xlu0 %847, %v844
      %v849 = vpop.permute.xlu0 %848
      %852 = vset.pattern.permute.xlu0 0
      %853 = vperm.xlu0 %852, %v845
      %v854 = vpop.permute.xlu0 %853
      %v856 = vrcp.pop %v849
      %v857 = vmul.f32 %v840, %v856
      %v858 = vrcp.pop %v854
      %v859 = vmul.f32 %v841, %v858
      %860 = vst [vmem:[#allocation8] sm:$0xff] %v857
      %861 = vst [vmem:[#allocation8 + $0x8] sm:$0xff] %v859
    $region29: #{tpu_custom_call.1} parent=1 // pred_fallthru
      _
    // Predicated region
    $region30: #{tpu_custom_call.1} parent=1 // pred_check
      _
    $region31: #{tpu_custom_call.1} parent=1 // pred_check_branch
      %863 = sbr.rel (0) target = $region33
    $region32: #{tpu_custom_call.1} parent=1 // pred_region
      %s865 = ssub.s32 256, 256
      %866 = vsyncadd [#allocation7], %s865
      %s867 = sshll.u32 [#allocation8], 4
      %s868 = int_to_ptr.vmem [resolvable:$true] %s867
      %873 = dma.vmem_to_hbm [thread:$0]  %s868, 256, %s5, [#allocation7], 128, 128, 8
    $region33: #{tpu_custom_call.1} parent=1 // pred_fallthru
      _
    // Predicated region
    $region34: #{tpu_custom_call.1} parent=1 // pred_check
      _
    $region35: #{tpu_custom_call.1} parent=1 // pred_check_branch
      %875 = sbr.rel (0) target = $region37
    $region36: #{tpu_custom_call.1} parent=1 // pred_region
      %876 = dma.done [#allocation7], 256
    $region37: #{tpu_custom_call.1} parent=1 // pred_fallthru
      _
    %877 = vsyncpa [#allocation6], 1
    %878 = vsyncpa [#allocation7], 1

</llo_original>
